<compile_context>
chip_gen: v5e
topology: v5e:2x2
jax: 0.10.0
libtpu: 0.0.40
codegen_flags: <defaults>
</compile_context>

<pallas_src>
import functools

import jax
import jax.numpy as jnp
from jax.experimental import pallas as pl
from jax.experimental.pallas import tpu as pltpu

EMBED_DIM = 256  # self.embedding_dim = 256 in the module


# ---------------------------------------------------------------------------
# Feature extractor (Wav2Vec2FeatureExtractor, do_normalize=True):
#   out = (x - mean) / sqrt(var + 1e-7), per sample (biased variance).
# Implemented as two streaming kernels tiled over N:
#   pass A: per-row sum and sum-of-squares -> mean, inv_std
#   pass B: apply (x - mean) * inv_std
# ---------------------------------------------------------------------------
def _audio_stats_kernel(a_ref, mean_ref, scale_ref, *, n_total):
    c = pl.program_id(0)

    @pl.when(c == 0)
    def _():
        mean_ref[...] = jnp.zeros_like(mean_ref)    # running sum
        scale_ref[...] = jnp.zeros_like(scale_ref)  # running sum of squares

    x = a_ref[...]                                            # (B, tN) f32
    mean_ref[...] += jnp.sum(x, axis=-1, keepdims=True)
    scale_ref[...] += jnp.sum(x * x, axis=-1, keepdims=True)

    @pl.when(c == pl.num_programs(0) - 1)
    def _():
        inv_n = 1.0 / n_total
        mean = mean_ref[...] * inv_n
        var = scale_ref[...] * inv_n - mean * mean            # biased var (HF)
        mean_ref[...] = mean
        scale_ref[...] = jax.lax.rsqrt(var + 1e-7)            # EUP rsqrt


def _audio_apply_kernel(a_ref, mean_ref, scale_ref, o_ref):
    o_ref[...] = (a_ref[...] - mean_ref[...]) * scale_ref[...]


def feature_extract(audio, *, block_n=None):
    B, N = audio.shape
    audio = audio.astype(jnp.float32)
    if block_n is None:
        block_n = N
        for cand in (4096, 2048, 1024, 512, 256, 128):
            if N % cand == 0:
                block_n = cand
                break
    assert N % block_n == 0, "block_n must divide N"
    n_chunks = N // block_n

    mean, scale = pl.pallas_call(
        functools.partial(_audio_stats_kernel, n_total=N),
        out_shape=(jax.ShapeDtypeStruct((B, 1), jnp.float32),
                   jax.ShapeDtypeStruct((B, 1), jnp.float32)),
        grid_spec=pltpu.PrefetchScalarGridSpec(
            num_scalar_prefetch=0,
            grid=(n_chunks,),
            in_specs=[pl.BlockSpec((B, block_n), lambda c: (0, c))],
            out_specs=(pl.BlockSpec((B, 1), lambda c: (0, 0)),
                       pl.BlockSpec((B, 1), lambda c: (0, 0))),
        ),
        compiler_params=pltpu.CompilerParams(
            dimension_semantics=("arbitrary",)),
    )(audio)

    return pl.pallas_call(
        _audio_apply_kernel,
        out_shape=jax.ShapeDtypeStruct((B, N), jnp.float32),
        grid_spec=pltpu.PrefetchScalarGridSpec(
            num_scalar_prefetch=0,
            grid=(n_chunks,),
            in_specs=[pl.BlockSpec((B, block_n), lambda c: (0, c)),
                      pl.BlockSpec((B, 1), lambda c: (0, 0)),
                      pl.BlockSpec((B, 1), lambda c: (0, 0))],
            out_specs=pl.BlockSpec((B, block_n), lambda c: (0, c)),
        ),
        compiler_params=pltpu.CompilerParams(
            dimension_semantics=("parallel",)),
    )(audio, mean, scale)


# ---------------------------------------------------------------------------
# Mean-pool over T + Linear(H -> E) + L2 normalize, streamed over T tiles.
#   pooled    = hidden_states.mean(dim=1)
#   embedding = pooled @ W + b
#   out       = embedding / max(||embedding||_2, 1e-12)
# ---------------------------------------------------------------------------
def _speaker_embed_kernel(h_ref, w_ref, b_ref, o_ref, acc_ref, *, inv_t):
    t = pl.program_id(1)

    @pl.when(t == 0)
    def _():
        acc_ref[...] = jnp.zeros_like(acc_ref)

    # Hot loop: load bf16 tile, cast to f32 immediately, accumulate raw sum.
    acc_ref[...] += jnp.sum(h_ref[...].astype(jnp.float32), axis=1)   # (bB, H)

    @pl.when(t == pl.num_programs(1) - 1)
    def _():
        pooled = acc_ref[...] * inv_t                                 # fold 1/T once
        emb = jnp.dot(pooled, w_ref[...],
                      preferred_element_type=jnp.float32) + b_ref[...]  # (bB, E)
        ss = jnp.sum(emb * emb, axis=1, keepdims=True)
        # F.normalize(p=2, dim=1, eps=1e-12): rsqrt(max(ss,1e-24)) == 1/max(||e||,1e-12)
        o_ref[...] = emb * jax.lax.rsqrt(jnp.maximum(ss, 1e-24))


def speaker_embedding(hidden_states, w, b, *, block_t=None, block_b=None):
    B, T, H = hidden_states.shape
    H2, E = w.shape
    assert H2 == H

    if block_t is None:
        block_t = T
        for cand in (256, 128, 64, 32, 16, 8):
            if T % cand == 0:
                block_t = cand
                break
    assert T % block_t == 0, "block_t must divide T"
    if block_b is None:
        block_b = 8 if B % 8 == 0 else B
    assert B % block_b == 0, "block_b must divide B"

    n_b, n_t = B // block_b, T // block_t
    w = w.astype(jnp.float32)
    b = b.reshape(1, E).astype(jnp.float32)

    itemsize = jnp.dtype(hidden_states.dtype).itemsize
    cost = pl.CostEstimate(
        flops=2 * B * H * E + B * T * H,
        transcendentals=B,
        bytes_accessed=B * T * H * itemsize + H * E * 4 + B * E * 4,
    )

    return pl.pallas_call(
        functools.partial(_speaker_embed_kernel, inv_t=1.0 / T),
        out_shape=jax.ShapeDtypeStruct((B, E), jnp.float32),
        grid_spec=pltpu.PrefetchScalarGridSpec(
            num_scalar_prefetch=0,
            grid=(n_b, n_t),
            in_specs=[
                pl.BlockSpec((block_b, block_t, H), lambda bi, ti: (bi, ti, 0)),
                pl.BlockSpec((H, E), lambda bi, ti: (0, 0)),
                pl.BlockSpec((1, E), lambda bi, ti: (0, 0)),
            ],
            out_specs=pl.BlockSpec((block_b, E), lambda bi, ti: (bi, 0)),
            scratch_shapes=[pltpu.VMEM((block_b, H), jnp.float32)],
        ),
        compiler_params=pltpu.CompilerParams(
            dimension_semantics=("parallel", "arbitrary")),
        cost_estimate=cost,
    )(hidden_states, w, b)


# ---------------------------------------------------------------------------
# Model wrapper
# ---------------------------------------------------------------------------
def speaker_embedding_model(audio, hidden_states, proj_w, proj_b,
                            *, block_n=None, block_t=None, block_b=None):
    norm_audio = feature_extract(audio, block_n=block_n)
    # TODO(synk): pretrained WavLM (Wav2Vec2Model) backbone would consume
    # `norm_audio` here; its output is stood in by the supplied hidden_states.
    emb = speaker_embedding(hidden_states, proj_w, proj_b,
                            block_t=block_t, block_b=block_b)
    return emb, norm_audio


# ---------------------------------------------------------------------------
# Pure-JAX references for correctness checks
# ---------------------------------------------------------------------------
def reference_feature_extract(audio):
    x = audio.astype(jnp.float32)
    mean = jnp.mean(x, axis=-1, keepdims=True)
    var = jnp.mean((x - mean) ** 2, axis=-1, keepdims=True)
    return (x - mean) / jnp.sqrt(var + 1e-7)


def reference_embedding(hidden_states, w, b):
    pooled = jnp.mean(hidden_states.astype(jnp.float32), axis=1)
    emb = jnp.dot(pooled, w) + b
    nrm = jnp.linalg.norm(emb, axis=1, keepdims=True)
    return emb / jnp.maximum(nrm, 1e-12)


if __name__ == "__main__":
    key = jax.random.PRNGKey(0)
    k_audio, k_hidden, k_w, k_b = jax.random.split(key, 4)

    B = 2
    N_SAMPLES = 2048          # raw audio samples (toy; real ~16 kHz * seconds)
    T, H = 32, 128            # backbone frames x hidden (toy; WavLM-base H=768)
    E = EMBED_DIM             # 256

    # waveform-ish audio with a small DC offset
    audio = jax.random.normal(k_audio, (B, N_SAMPLES), jnp.float32) * 0.1 + 0.05
    # backbone output stand-in, kept bf16 in HBM (halves the dominant read)
    hidden_states = jax.random.normal(
        k_hidden, (B, T, H), dtype=jnp.float32).astype(jnp.bfloat16)

    # nn.Linear(H, 256) init: U(-1/sqrt(H), 1/sqrt(H)) for weight and bias.
    bound = 1.0 / (H ** 0.5)
    proj_w = jax.random.uniform(k_w, (H, E), minval=-bound, maxval=bound,
                                dtype=jnp.float32)
    proj_b = jax.random.uniform(k_b, (E,), minval=-bound, maxval=bound,
                                dtype=jnp.float32)

    emb, norm_audio = speaker_embedding_model(
        audio, hidden_states, proj_w, proj_b,
        block_n=512, block_t=8)             # exercise the tiled/streamed paths
    emb = jax.block_until_ready(emb)
    norm_audio = jax.block_until_ready(norm_audio)

    ref_audio = reference_feature_extract(audio)
    ref_emb = reference_embedding(hidden_states, proj_w, proj_b)

    assert emb.shape == (B, E)
    assert norm_audio.shape == (B, N_SAMPLES)
    assert jnp.allclose(norm_audio, ref_audio, atol=1e-4, rtol=1e-4), \
        "feature-extractor mismatch vs reference"
    assert jnp.allclose(emb, ref_emb, atol=2e-3, rtol=2e-3), \
        "embedding mismatch vs reference"
    # rows should be unit-norm
    assert jnp.allclose(jnp.linalg.norm(emb, axis=1), 1.0, atol=1e-4)

    print("KERNEL_OK")
</pallas_src>

<mosaic_0001>
module attributes {stable_mosaic.version = 11 : i64} {
  func.func @_audio_stats_kernel(%arg0: i32, %arg1: memref<2x512xf32, #tpu.memory_space<vmem>>, %arg2: memref<2x1xf32, #tpu.memory_space<vmem>>, %arg3: memref<2x1xf32, #tpu.memory_space<vmem>>) attributes {dimension_semantics = [#tpu.dimension_semantics<arbitrary>], iteration_bounds = array<i64: 4>, scalar_prefetch = 0 : i64, scratch_operands = 0 : i64, tpu.core_type = #tpu.core_type<tc>, window_params = [{transform_indices = @transform_0, window_bounds = array<i64: 2, 512>}, {pipeline_mode = #tpu.pipeline_mode<synchronous>, transform_indices = @transform_1, window_bounds = array<i64: 2, 1>}, {pipeline_mode = #tpu.pipeline_mode<synchronous>, transform_indices = @transform_2, window_bounds = array<i64: 2, 1>}]} {
    %c0_i32 = arith.constant 0 : i32
    %0 = arith.cmpi eq, %arg0, %c0_i32 : i32
    %1 = arith.extui %0 : i1 to i32
    %c0_i32_0 = arith.constant 0 : i32
    %2 = arith.cmpi ne, %1, %c0_i32_0 : i32
    scf.if %2 {
      %cst_12 = arith.constant 0.000000e+00 : f32
      %18 = vector.broadcast %cst_12 : f32 to vector<2x1xf32>
      %c0_13 = arith.constant 0 : index
      %c0_14 = arith.constant 0 : index
      %19 = vector.load %arg2[%c0_13, %c0_14] : memref<2x1xf32, #tpu.memory_space<vmem>>, vector<2x1xf32>
      tpu.vector_store %arg2[%c0_13, %c0_14], %18 {strides = array<i32>} : memref<2x1xf32, #tpu.memory_space<vmem>>, vector<2x1xf32>,
      %cst_15 = arith.constant 0.000000e+00 : f32
      %20 = vector.broadcast %cst_15 : f32 to vector<2x1xf32>
      %c0_16 = arith.constant 0 : index
      %c0_17 = arith.constant 0 : index
      %21 = vector.load %arg3[%c0_16, %c0_17] : memref<2x1xf32, #tpu.memory_space<vmem>>, vector<2x1xf32>
      tpu.vector_store %arg3[%c0_16, %c0_17], %20 {strides = array<i32>} : memref<2x1xf32, #tpu.memory_space<vmem>>, vector<2x1xf32>,
    } else {
    }
    %c0 = arith.constant 0 : index
    %c0_1 = arith.constant 0 : index
    %3 = vector.load %arg1[%c0, %c0_1] : memref<2x512xf32, #tpu.memory_space<vmem>>, vector<2x512xf32>
    %c0_2 = arith.constant 0 : index
    %c0_3 = arith.constant 0 : index
    %4 = vector.load %arg2[%c0_2, %c0_3] : memref<2x1xf32, #tpu.memory_space<vmem>>, vector<2x1xf32>
    %cst = arith.constant dense<0.000000e+00> : vector<2xf32>
    %5 = vector.multi_reduction <add>, %3, %cst [1] : vector<2x512xf32> to vector<2xf32>
    %6 = vector.shape_cast %5 : vector<2xf32> to vector<2x1xf32>
    %7 = arith.addf %4, %6 : vector<2x1xf32>
    %c0_4 = arith.constant 0 : index
    %c0_5 = arith.constant 0 : index
    %8 = vector.load %arg2[%c0_4, %c0_5] : memref<2x1xf32, #tpu.memory_space<vmem>>, vector<2x1xf32>
    tpu.vector_store %arg2[%c0_4, %c0_5], %7 {strides = array<i32>} : memref<2x1xf32, #tpu.memory_space<vmem>>, vector<2x1xf32>,
    %c0_6 = arith.constant 0 : index
    %c0_7 = arith.constant 0 : index
    %9 = vector.load %arg3[%c0_6, %c0_7] : memref<2x1xf32, #tpu.memory_space<vmem>>, vector<2x1xf32>
    %10 = arith.mulf %3, %3 : vector<2x512xf32>
    %cst_8 = arith.constant dense<0.000000e+00> : vector<2xf32>
    %11 = vector.multi_reduction <add>, %10, %cst_8 [1] : vector<2x512xf32> to vector<2xf32>
    %12 = vector.shape_cast %11 : vector<2xf32> to vector<2x1xf32>
    %13 = arith.addf %9, %12 : vector<2x1xf32>
    %c0_9 = arith.constant 0 : index
    %c0_10 = arith.constant 0 : index
    %14 = vector.load %arg3[%c0_9, %c0_10] : memref<2x1xf32, #tpu.memory_space<vmem>>, vector<2x1xf32>
    tpu.vector_store %arg3[%c0_9, %c0_10], %13 {strides = array<i32>} : memref<2x1xf32, #tpu.memory_space<vmem>>, vector<2x1xf32>,
    %c3_i32 = arith.constant 3 : i32
    %15 = arith.cmpi eq, %arg0, %c3_i32 : i32
    %16 = arith.extui %15 : i1 to i32
    %c0_i32_11 = arith.constant 0 : i32
    %17 = arith.cmpi ne, %16, %c0_i32_11 : i32
    scf.if %17 {
      %c0_12 = arith.constant 0 : index
      %c0_13 = arith.constant 0 : index
      %18 = vector.load %arg2[%c0_12, %c0_13] : memref<2x1xf32, #tpu.memory_space<vmem>>, vector<2x1xf32>
      %cst_14 = arith.constant 4.8828125E-4 : f32
      %19 = vector.broadcast %cst_14 : f32 to vector<2x1xf32>
      %20 = arith.mulf %18, %19 : vector<2x1xf32>
      %c0_15 = arith.constant 0 : index
      %c0_16 = arith.constant 0 : index
      %21 = vector.load %arg3[%c0_15, %c0_16] : memref<2x1xf32, #tpu.memory_space<vmem>>, vector<2x1xf32>
      %cst_17 = arith.constant 4.8828125E-4 : f32
      %22 = vector.broadcast %cst_17 : f32 to vector<2x1xf32>
      %23 = arith.mulf %21, %22 : vector<2x1xf32>
      %24 = arith.mulf %20, %20 : vector<2x1xf32>
      %25 = arith.subf %23, %24 : vector<2x1xf32>
      %c0_18 = arith.constant 0 : index
      %c0_19 = arith.constant 0 : index
      %26 = vector.load %arg2[%c0_18, %c0_19] : memref<2x1xf32, #tpu.memory_space<vmem>>, vector<2x1xf32>
      tpu.vector_store %arg2[%c0_18, %c0_19], %20 {strides = array<i32>} : memref<2x1xf32, #tpu.memory_space<vmem>>, vector<2x1xf32>,
      %cst_20 = arith.constant 1.000000e-07 : f32
      %27 = vector.broadcast %cst_20 : f32 to vector<2x1xf32>
      %28 = arith.addf %25, %27 : vector<2x1xf32>
      %29 = math.rsqrt %28 : vector<2x1xf32>
      %c0_21 = arith.constant 0 : index
      %c0_22 = arith.constant 0 : index
      %30 = vector.load %arg3[%c0_21, %c0_22] : memref<2x1xf32, #tpu.memory_space<vmem>>, vector<2x1xf32>
      tpu.vector_store %arg3[%c0_21, %c0_22], %29 {strides = array<i32>} : memref<2x1xf32, #tpu.memory_space<vmem>>, vector<2x1xf32>,
    } else {
    }
    return
  }
  func.func @transform_0(%arg0: i32) -> (i32, i32) {
    %c0_i32 = arith.constant 0 : i32
    %c0_i32_0 = arith.constant 0 : i32
    return %c0_i32, %arg0 : i32, i32
  }
  func.func @transform_1(%arg0: i32) -> (i32, i32) {
    %c0_i32 = arith.constant 0 : i32
    %c0_i32_0 = arith.constant 0 : i32
    %c0_i32_1 = arith.constant 0 : i32
    return %c0_i32, %c0_i32_0 : i32, i32
  }
  func.func @transform_2(%arg0: i32) -> (i32, i32) {
    %c0_i32 = arith.constant 0 : i32
    %c0_i32_0 = arith.constant 0 : i32
    %c0_i32_1 = arith.constant 0 : i32
    return %c0_i32, %c0_i32_0 : i32, i32
  }
}

</mosaic_0001>

<llo_original>
// kernel: tpu_custom_call.1
$region0: #{tpu_custom_call.1}
  #allocation0 [shape = 'u32[]', space=smem, size = 0x4, offset = 0x4, fixed_abs, tag = 'smem constant byte address 0x4 - core index']
  #allocation1 [shape = 'u32[72,128]{1,0:T(1,128)}', space=vmem, size = 0x9000, scoped, tag = 'internal scratch']
  %s0 = inlined_call_operand.hbm [shape: f32[2,2048], index: 0, kind: input, shape index: {}]
  %s1 = inlined_call_operand.vmem [shape: f32[2,1], index: 1, kind: output, shape index: {0}]
  %s2 = inlined_call_operand.vmem [shape: f32[2,1], index: 2, kind: output, shape index: {1}]
  %3 = xla_tuple %s1, %s2
  %s4 = sld [smem:[#allocation0]]
  $region57: #{tpu_custom_call.1} parent=0
    _
  %s6 = ssub.s32 1, %s4
  %s7 = scalar_select 0, %s6, %s4
  $region1: #{tpu_custom_call.1} parent=0
    #allocation2 [shape = 'u8[8192]{0}', space=vmem, size = 0x2000, scoped, tag = 'input window, operand 0']
    #allocation3 [shape = 's32[2]{0}', space=sflag, size = 0x8, scoped, tag = 'scoped memory for tpu_custom_call.1']
    %8 = vsyncpa [#allocation3], 0
    %s9 = scalar_lea.sflag [#allocation3], 1
    %10 = vsyncpa %s9, 0
    loop: start=0, step=1, limit=6
    $region2: #{tpu_custom_call.1} parent=1 // loop_pre_header
      _
    $region3: #{tpu_custom_call.1} parent=1 // loop_header
      %s12 = sphi 0, %s16
      %p13 = scmp.ge.s32.totalorder %s12, 6
      %s22 = sphi 0, %s24
      %s25 = sphi 0, %s22
      %s26 = sphi 0, %s25
      %s42 = sphi 0, %s26
      %s46 = sphi 0, %s46
      %s48 = sphi 0, %s46
      %s49 = sphi 0, %s48
      %s63 = sphi 0, %s49
      %s67 = sphi 0, %s67
      %s69 = sphi 0, %s67
      %s70 = sphi 0, %s69
      %s84 = sphi 0, %s70
    $region4: #{tpu_custom_call.1} parent=1 // loop_header_branch
      %15 = sbr.rel (%p13) target = $region8
    $region5: #{tpu_custom_call.1} parent=1 // loop_body
      %s17 = ssub.s32 %s12, 1
      %s18 = ssub.s32 %s12, 2
      %s19 = sadd.s32 %s12, 1
      %s20 = ssub.s32 %s12, %s19
      %p21 = scmp.eq.s32.totalorder %s20, 0
      %s23 = sadd.s32 %s22, 1
      %s24 = scalar_select %p21, %s22, %s23
      %p27 = pneg %p21
      %p28 = scmp.eq.s32.totalorder %s12, 3
      %p29 = por %p27, %p28
      %p30 = scmp.ne.s32.totalorder %s22, %s25
      %p31 = scmp.eq.s32.totalorder %s12, 0
      %p32 = por %p30, %p31
      %p33 = scmp.ne.s32.totalorder %s22, %s25
      %p34 = scmp.eq.s32.totalorder %s17, 3
      %p35 = por %p33, %p34
      %p36 = scmp.ne.s32.totalorder %s25, %s26
      %p37 = scmp.eq.s32.totalorder %s17, 0
      %p38 = por %p36, %p37
      %p39 = scmp.ne.s32.totalorder %s25, %s26
      %p40 = scmp.eq.s32.totalorder %s18, 3
      %p41 = por %p39, %p40
      %p43 = scmp.ne.s32.totalorder %s26, %s42
      %p44 = scmp.eq.s32.totalorder %s18, 0
      %p45 = por %p43, %p44
      %s47 = sadd.s32 %s46, 1
      %p50 = scmp.eq.s32.totalorder %s12, 3
      %p51 = scmp.ne.s32.totalorder %s46, %s48
      %p52 = scmp.eq.s32.totalorder %s12, 0
      %p53 = por %p51, %p52
      %p54 = scmp.ne.s32.totalorder %s46, %s48
      %p55 = scmp.eq.s32.totalorder %s17, 3
      %p56 = por %p54, %p55
      %p57 = scmp.ne.s32.totalorder %s48, %s49
      %p58 = scmp.eq.s32.totalorder %s17, 0
      %p59 = por %p57, %p58
      %p60 = scmp.ne.s32.totalorder %s48, %s49
      %p61 = scmp.eq.s32.totalorder %s18, 3
      %p62 = por %p60, %p61
      %p64 = scmp.ne.s32.totalorder %s49, %s63
      %p65 = scmp.eq.s32.totalorder %s18, 0
      %p66 = por %p64, %p65
      %s68 = sadd.s32 %s67, 1
      %p71 = scmp.eq.s32.totalorder %s12, 3
      %p72 = scmp.ne.s32.totalorder %s67, %s69
      %p73 = scmp.eq.s32.totalorder %s12, 0
      %p74 = por %p72, %p73
      %p75 = scmp.ne.s32.totalorder %s67, %s69
      %p76 = scmp.eq.s32.totalorder %s17, 3
      %p77 = por %p75, %p76
      %p78 = scmp.ne.s32.totalorder %s69, %s70
      %p79 = scmp.eq.s32.totalorder %s17, 0
      %p80 = por %p78, %p79
      %p81 = scmp.ne.s32.totalorder %s69, %s70
      %p82 = scmp.eq.s32.totalorder %s18, 3
      %p83 = por %p81, %p82
      %p85 = scmp.ne.s32.totalorder %s70, %s84
      %p86 = scmp.eq.s32.totalorder %s18, 0
      %p87 = por %p85, %p86
      %p88 = scmp.le.s32.totalorder 1, %s12
      %p89 = scmp.lt.s32.totalorder %s12, 5
      %p90 = pnand %p88, %p89
      %p91 = pneg %p90
      // Predicated region
      $region9: #{tpu_custom_call.1} parent=5 // pred_check
        _
      $region10: #{tpu_custom_call.1} parent=5 // pred_check_branch
        %93 = sbr.rel (%p90) target = $region12
      $region11: #{tpu_custom_call.1} parent=5 // pred_region
        %s94 = ssub.s32 %s12, 1
      $region12: #{tpu_custom_call.1} parent=5 // pred_fallthru
        _
      %p95 = scmp.lt.s32.totalorder %s12, 4
      // Predicated region
      $region13: #{tpu_custom_call.1} parent=5 // pred_check
        %p96 = pneg %p95
      $region14: #{tpu_custom_call.1} parent=5 // pred_check_branch
        %98 = sbr.rel (%p96) target = $region16
      $region15: #{tpu_custom_call.1} parent=5 // pred_region
        // Predicated region
        $region17: #{tpu_custom_call.1} parent=15 // pred_check
          %p99 = pneg %p32
        $region18: #{tpu_custom_call.1} parent=15 // pred_check_branch
          %101 = sbr.rel (%p99) target = $region20
        $region19: #{tpu_custom_call.1} parent=15 // pred_region
          %s102 = sand.u32 %s22, 1
          %s103 = scalar_lea.sflag [#allocation3], %s102
          %s104 = sand.u32 %s22, 1
          %s105 = smul.addr %s104, 8
          %s106 = scalar_lea.vmem [#allocation2], %s105
          %s107 = smul.u32 4, %s12
          %109 = vsyncadd %s103, 0
          %s110 = smul.addr %s107, 2
          %s111 = scalar_lea.hbm %s0, %s110
          %s113 = sshll.u32 %s111, 4
          %s114 = int_to_ptr.hbm [resolvable:$true] %s113
          %s115 = sshll.u32 %s106, 4
          %s116 = int_to_ptr.vmem [resolvable:$true] %s115
          %118 = dma.hbm_to_vmem [thread:$0]  %s114, 128, %s116, %s103
        $region20: #{tpu_custom_call.1} parent=15 // pred_fallthru
          _
      $region16: #{tpu_custom_call.1} parent=5 // pred_fallthru
        _
      %p119 = scmp.le.s32.totalorder 1, %s12
      %p120 = scmp.lt.s32.totalorder %s12, 5
      %p121 = pnand %p119, %p120
      %p122 = pneg %p121
      // Predicated region
      $region21: #{tpu_custom_call.1} parent=5 // pred_check
        _
      $region22: #{tpu_custom_call.1} parent=5 // pred_check_branch
        %124 = sbr.rel (%p121) target = $region24
      $region23: #{tpu_custom_call.1} parent=5 // pred_region
        %s125 = ssub.s32 %s12, 1
        %s126 = sand.u32 %s25, 1
        %s127 = scalar_lea.sflag [#allocation3], %s126
        %s128 = sand.u32 %s25, 1
        %s129 = smul.addr %s128, 8
        %s130 = scalar_lea.vmem [#allocation2], %s129
        // Predicated region
        $region25: #{tpu_custom_call.1} parent=23 // pred_check
          %p131 = pneg %p38
        $region26: #{tpu_custom_call.1} parent=23 // pred_check_branch
          %133 = sbr.rel (%p131) target = $region28
        $region27: #{tpu_custom_call.1} parent=23 // pred_region
          %135 = dma.done %s127, 128
        $region28: #{tpu_custom_call.1} parent=23 // pred_fallthru
          _
        %s136 = sand.u32 %s25, 1
        %s137 = scalar_lea.sflag [#allocation3], %s136
        %s138 = sand.u32 %s25, 1
        %s139 = smul.addr %s138, 8
        %s140 = scalar_lea.vmem [#allocation2], %s139
        %p141 = pneg %p38
        %p142 = pneg %p35
        %p143 = pneg %p59
        %p144 = pneg %p56
        %p145 = pneg %p80
        %p146 = pneg %p77
        %s147 = smul.u32 4, %s17
        %p148 = scmp.eq.s32.totalorder %s17, 0
        // Predicated region
        $region29: #{tpu_custom_call.1} parent=23 // pred_check
          %p149 = pneg %p148
        $region30: #{tpu_custom_call.1} parent=23 // pred_check_branch
          %151 = sbr.rel (%p149) target = $region32
        $region31: #{tpu_custom_call.1} parent=23 // pred_region
          %vm152 = vcmask 1024
          %153 = vst.msk [vmem:[%s1] sm:$0x3] %vm152, 0.0
          %154 = vst.msk [vmem:[%s2] sm:$0x3] %vm152, 0.0
        $region32: #{tpu_custom_call.1} parent=23 // pred_fallthru
          _
        %v155 = vld [vmem:[%s130] sm:$0xff]
        %v156 = vld [vmem:[%s1] sm:$0x3]
        %158 = vst [vmem:[#allocation1] ss:$4 sm:$0xff] %v155
        %v159 = vld.sshfl [vmem:[#allocation1] sm:$0xff pattern:$0x73625140]
        %v160 = vld.sshfl [vmem:[#allocation1 + $0x8] sm:$0xff pattern:$0x73625140]
        %v161 = vld.sshfl [vmem:[#allocation1 + $0x10] sm:$0xff pattern:$0x73625140]
        %v162 = vld.sshfl [vmem:[#allocation1 + $0x18] sm:$0xff pattern:$0x73625140]
        %vm167 = vcmask 1041408
        %v168 = vsel %vm167, %v159, 0.0
        %v169 = vsel %vm167, %v160, 0.0
        %v170 = vadd.f32 %v168, %v169
        %v171 = vsel %vm167, %v161, 0.0
        %v172 = vadd.f32 %v170, %v171
        %v173 = vsel %vm167, %v162, 0.0
        %v174 = vadd.f32 %v172, %v173
        %175 = vadd.xlane.f32.xlu0 %v174
        %v176 = vpop.xlane.xlu0 %175
        %v177 = vadd.f32 %v156, %v176
        %vm178 = vcmask 1024
        %179 = vst.msk [vmem:[%s1] sm:$0x3] %vm178, %v177
        %v180 = vld [vmem:[%s2] sm:$0x3]
        %v181 = vmul.f32 %v155, %v155
        %183 = vst [vmem:[#allocation1] ss:$4 sm:$0xff] %v181
        %v184 = vld.sshfl [vmem:[#allocation1] sm:$0xff pattern:$0x73625140]
        %v185 = vld.sshfl [vmem:[#allocation1 + $0x8] sm:$0xff pattern:$0x73625140]
        %v186 = vld.sshfl [vmem:[#allocation1 + $0x10] sm:$0xff pattern:$0x73625140]
        %v187 = vld.sshfl [vmem:[#allocation1 + $0x18] sm:$0xff pattern:$0x73625140]
        %v192 = vsel %vm167, %v184, 0.0
        %v193 = vsel %vm167, %v185, 0.0
        %v194 = vadd.f32 %v192, %v193
        %v195 = vsel %vm167, %v186, 0.0
        %v196 = vadd.f32 %v194, %v195
        %v197 = vsel %vm167, %v187, 0.0
        %v198 = vadd.f32 %v196, %v197
        %199 = vadd.xlane.f32.xlu0 %v198
        %v200 = vpop.xlane.xlu0 %199
        %v201 = vadd.f32 %v180, %v200
        %202 = vst.msk [vmem:[%s2] sm:$0x3] %vm178, %v201
        %p203 = scmp.eq.s32.totalorder %s17, 3
        // Predicated region
        $region33: #{tpu_custom_call.1} parent=23 // pred_check
          %p204 = pneg %p203
        $region34: #{tpu_custom_call.1} parent=23 // pred_check_branch
          %206 = sbr.rel (%p204) target = $region36
        $region35: #{tpu_custom_call.1} parent=23 // pred_region
          %v207 = vld [vmem:[%s1] sm:$0x3]
          %v208 = vmul.f32 %v207, 0.00048828125
          %v209 = vld [vmem:[%s2] sm:$0x3]
          %v210 = vmul.f32 %v209, 0.00048828125
          %v211 = vmul.f32 %v208, %v208
          %v212 = vsub.f32 %v210, %v211
          %213 = vst.msk [vmem:[%s1] sm:$0x3] %vm178, %v208
          %v214 = vadd.f32 %v212, 1e-07
          %v215 = vrsqrt.pop %v214
          %v216 = vmul.f32 %v215, %v214
          %v217 = vmul.f32 %v216, %v215
          %v218 = vmul.f32 0.5, %v217
          %v219 = vsub.f32 1.5, %v218
          %v220 = vmul.f32 %v215, %v219
          %vm221 = vweird.f32 %v214
          %vm222 = vweird.f32 %v215
          %vm223 = vmor %vm221, %vm222
          %v224 = vsel %vm223, %v215, %v220
          %225 = vst.msk [vmem:[%s2] sm:$0x3] %vm178, %v224
        $region36: #{tpu_custom_call.1} parent=23 // pred_fallthru
          _
        // Predicated region
        $region37: #{tpu_custom_call.1} parent=23 // pred_check
          %p226 = pneg %p56
        $region38: #{tpu_custom_call.1} parent=23 // pred_check_branch
          %228 = sbr.rel (%p226) target = $region40
        $region39: #{tpu_custom_call.1} parent=23 // pred_region
          _
        $region40: #{tpu_custom_call.1} parent=23 // pred_fallthru
          _
        // Predicated region
        $region41: #{tpu_custom_call.1} parent=23 // pred_check
          %p229 = pneg %p77
        $region42: #{tpu_custom_call.1} parent=23 // pred_check_branch
          %231 = sbr.rel (%p229) target = $region44
        $region43: #{tpu_custom_call.1} parent=23 // pred_region
          _
        $region44: #{tpu_custom_call.1} parent=23 // pred_fallthru
          _
        // Predicated region
        $region45: #{tpu_custom_call.1} parent=23 // pred_check
          %p232 = pneg %p56
        $region46: #{tpu_custom_call.1} parent=23 // pred_check_branch
          %234 = sbr.rel (%p232) target = $region48
        $region47: #{tpu_custom_call.1} parent=23 // pred_region
          _
        $region48: #{tpu_custom_call.1} parent=23 // pred_fallthru
          _
        // Predicated region
        $region49: #{tpu_custom_call.1} parent=23 // pred_check
          %p235 = pneg %p77
        $region50: #{tpu_custom_call.1} parent=23 // pred_check_branch
          %237 = sbr.rel (%p235) target = $region52
        $region51: #{tpu_custom_call.1} parent=23 // pred_region
          _
        $region52: #{tpu_custom_call.1} parent=23 // pred_fallthru
          _
      $region24: #{tpu_custom_call.1} parent=5 // pred_fallthru
        _
      %p238 = scmp.le.s32.totalorder 2, %s12
      // Predicated region
      $region53: #{tpu_custom_call.1} parent=5 // pred_check
        %p239 = pneg %p238
      $region54: #{tpu_custom_call.1} parent=5 // pred_check_branch
        %241 = sbr.rel (%p239) target = $region56
      $region55: #{tpu_custom_call.1} parent=5 // pred_region
        %s242 = ssub.s32 %s12, 2
      $region56: #{tpu_custom_call.1} parent=5 // pred_fallthru
        _
    $region6: #{tpu_custom_call.1} parent=1 // loop_footer
      %s16 = sadd.s32 1, %s12
    $region7: #{tpu_custom_call.1} parent=1 // loop_footer_branch
      %11 = sbr.rel target = $region3
    $region8: #{tpu_custom_call.1} parent=1 // loop_exit
      _
    %243 = vsyncpa [#allocation3], 1
    %s244 = scalar_lea.sflag [#allocation3], 1
    %245 = vsyncpa %s244, 1

</llo_original>
